<compile_context>
chip_gen: v5e
topology: v5e:2x2
jax: 0.10.0
libtpu: 0.0.40
codegen_flags: <defaults>
</compile_context>

<pallas_src>
import jax
import jax.numpy as jnp
from jax.experimental import pallas as pl
from jax.experimental.pallas import tpu as pltpu

IN_DIM = 28 * 28   # 784
HID_DIM = 128
OUT_DIM = 10
OUT_PAD = 128      # lane-dense padded output width
TILE_B = 2048      # max rows per grid step (f32 x tile ~6.3 MiB, dbl-buffered)


def _round_up(n, m):
    return ((n + m - 1) // m) * m


def _mlp_kernel(x_ref, w1_ref, b1_ref, w2_ref, b2_ref, o_ref):
    # Cast x f32 -> bf16 in-kernel (VPU, hidden under the DMA), then fc1 on MXU
    # with f32 accumulation.
    xb = x_ref[...].astype(jnp.bfloat16)
    h = jnp.dot(xb, w1_ref[...], preferred_element_type=jnp.float32)
    # bias + ReLU in f32 on the VPU (v5e has no bf16 VPU).
    h = jnp.maximum(h + b1_ref[...], 0.0)
    # fc2: deliberate bf16 downcast of the fc1 activation before the MXU.
    out = jnp.dot(h.astype(jnp.bfloat16), w2_ref[...],
                  preferred_element_type=jnp.float32)
    o_ref[...] = (out + b2_ref[...]).astype(o_ref.dtype)


def prepare_params(w1, b1, w2, b2):
    """One-time weight prep (hoisted out of the per-call forward).

    w1: (784, 128), b1: (128,) or (1,128), w2: (128, 10), b2: (10,) or (1,10)
    (weights are [in, out], i.e. transposed vs PyTorch's nn.Linear storage).
    """
    w1b = w1.astype(jnp.bfloat16)
    w2p = jnp.pad(w2, ((0, 0), (0, OUT_PAD - OUT_DIM))).astype(jnp.bfloat16)
    b1r = jnp.reshape(b1, (1, HID_DIM)).astype(jnp.float32)
    b2p = jnp.pad(jnp.reshape(b2, (1, OUT_DIM)),
                  ((0, 0), (0, OUT_PAD - OUT_DIM))).astype(jnp.float32)
    return w1b, b1r, w2p, b2p


def linear_model_forward(x, prepared_params, *, tile_b=TILE_B):
    """Forward pass of LinearModel in one fused, batch-tiled Pallas kernel.

    x: any shape whose trailing elements are a multiple of 784
       (e.g. (B, 1, 28, 28)).  Returns (B, 10) float32 logits.
    """
    w1b, b1r, w2p, b2p = prepared_params
    x2 = x.reshape(-1, IN_DIM).astype(jnp.float32)   # glue: x.view(-1, 28*28)
    batch = x2.shape[0]

    # Tile: multiple of 16 (bf16 sublane packing on the output), capped by
    # tile_b, and no larger than half the batch so v7x's two TCs both get work.
    tb = max(16, min(tile_b, _round_up(pl.cdiv(batch, 2), 16)))
    grid = (pl.cdiv(batch, tb),)

    flops = 2 * batch * (IN_DIM * HID_DIM + HID_DIM * OUT_PAD)
    bytes_accessed = (batch * IN_DIM * 4                          # x (f32)
                      + IN_DIM * HID_DIM * 2 + HID_DIM * OUT_PAD * 2   # weights
                      + (HID_DIM + OUT_PAD) * 4                   # biases
                      + batch * OUT_PAD * 2)                      # output (bf16)

    out = pl.pallas_call(
        _mlp_kernel,
        out_shape=jax.ShapeDtypeStruct((batch, OUT_PAD), jnp.bfloat16),
        grid=grid,
        in_specs=[
            pl.BlockSpec((tb, IN_DIM), lambda i: (i, 0)),        # x: batch-tiled
            pl.BlockSpec((IN_DIM, HID_DIM), lambda i: (0, 0)),   # w1: resident
            pl.BlockSpec((1, HID_DIM), lambda i: (0, 0)),        # b1: resident
            pl.BlockSpec((HID_DIM, OUT_PAD), lambda i: (0, 0)),  # w2: resident
            pl.BlockSpec((1, OUT_PAD), lambda i: (0, 0)),        # b2: resident
        ],
        out_specs=pl.BlockSpec((tb, OUT_PAD), lambda i: (i, 0)),
        compiler_params=pltpu.CompilerParams(
            dimension_semantics=("parallel",),
            vmem_limit_bytes=48 * 1024 * 1024),
        cost_estimate=pl.CostEstimate(
            flops=flops, transcendentals=0, bytes_accessed=bytes_accessed),
    )(x2, w1b, b1r, w2p, b2p)

    return out[:, :OUT_DIM].astype(jnp.float32)


def init_params(key):
    """Deterministic init mimicking PyTorch nn.Linear (uniform +-1/sqrt(fan_in))."""
    k1, k2, k3, k4 = jax.random.split(key, 4)
    bound1 = 1.0 / jnp.sqrt(IN_DIM)
    bound2 = 1.0 / jnp.sqrt(HID_DIM)
    w1 = jax.random.uniform(k1, (IN_DIM, HID_DIM), jnp.float32, -bound1, bound1)
    b1 = jax.random.uniform(k2, (1, HID_DIM), jnp.float32, -bound1, bound1)
    w2 = jax.random.uniform(k3, (HID_DIM, OUT_DIM), jnp.float32, -bound2, bound2)
    b2 = jax.random.uniform(k4, (1, OUT_DIM), jnp.float32, -bound2, bound2)
    return w1, b1, w2, b2


def _reference(x2, w1, b1, w2, b2):
    """Plain-JAX reference mirroring the kernel's bf16 quantization points."""
    # TODO(synk): against a pure-f32 PyTorch LinearModel the bf16 MXU feeds /
    # bf16 logits store can deviate beyond 1e-3 (fine for classification).
    f32 = jnp.float32
    hi = jax.lax.Precision.HIGHEST
    xb = x2.astype(jnp.bfloat16).astype(f32)
    w1b = w1.astype(jnp.bfloat16).astype(f32)
    w2b = w2.astype(jnp.bfloat16).astype(f32)
    h = jnp.maximum(jnp.dot(xb, w1b, precision=hi) + b1.reshape(1, HID_DIM), 0.0)
    hb = h.astype(jnp.bfloat16).astype(f32)
    logits = jnp.dot(hb, w2b, precision=hi) + b2.reshape(1, OUT_DIM)
    return logits.astype(jnp.bfloat16).astype(f32)


if __name__ == "__main__":
    key = jax.random.PRNGKey(0)
    kx, kp = jax.random.split(key)
    w1, b1, w2, b2 = init_params(kp)
    params = prepare_params(w1, b1, w2, b2)

    # Small MNIST-like batch: (B=2, C=1, H=28, W=28), NCHW like the PyTorch input.
    x = jax.random.normal(kx, (2, 1, 28, 28), jnp.float32)
    out = jax.block_until_ready(linear_model_forward(x, params))
    ref = _reference(x.reshape(-1, IN_DIM), w1, b1, w2, b2)
    assert out.shape == (2, OUT_DIM)
    assert jnp.allclose(out, ref, atol=1e-2, rtol=1e-2)

    # Second check: batch not divisible by the tile -> multi-step grid with a
    # masked partial final block (no wrapper-side padding).
    x_big = jax.random.normal(jax.random.PRNGKey(1), (50, 1, 28, 28), jnp.float32)
    out_big = jax.block_until_ready(linear_model_forward(x_big, params))
    ref_big = _reference(x_big.reshape(-1, IN_DIM), w1, b1, w2, b2)
    assert out_big.shape == (50, OUT_DIM)
    assert jnp.allclose(out_big, ref_big, atol=1e-2, rtol=1e-2)

    print("KERNEL_OK")
</pallas_src>

<mosaic_0001>
module attributes {stable_mosaic.version = 11 : i64} {
  func.func @_mlp_kernel(%arg0: i32, %arg1: memref<16x784xf32, #tpu.memory_space<vmem>>, %arg2: memref<784x128xbf16, #tpu.memory_space<vmem>>, %arg3: memref<1x128xf32, #tpu.memory_space<vmem>>, %arg4: memref<128x128xbf16, #tpu.memory_space<vmem>>, %arg5: memref<1x128xf32, #tpu.memory_space<vmem>>, %arg6: memref<16x128xbf16, #tpu.memory_space<vmem>>) attributes {dimension_semantics = [#tpu.dimension_semantics<parallel>], iteration_bounds = array<i64: 1>, scalar_prefetch = 0 : i64, scratch_operands = 0 : i64, tpu.core_type = #tpu.core_type<tc>, window_params = [{transform_indices = @transform_0, window_bounds = array<i64: 16, 784>}, {pipeline_mode = #tpu.pipeline_mode<synchronous>, transform_indices = @transform_1, window_bounds = array<i64: 784, 128>}, {pipeline_mode = #tpu.pipeline_mode<synchronous>, transform_indices = @transform_2, window_bounds = array<i64: 1, 128>}, {pipeline_mode = #tpu.pipeline_mode<synchronous>, transform_indices = @transform_3, window_bounds = array<i64: 128, 128>}, {pipeline_mode = #tpu.pipeline_mode<synchronous>, transform_indices = @transform_4, window_bounds = array<i64: 1, 128>}, {transform_indices = @transform_5, window_bounds = array<i64: 16, 128>}]} {
    %c0 = arith.constant 0 : index
    %c0_0 = arith.constant 0 : index
    %0 = vector.load %arg1[%c0, %c0_0] : memref<16x784xf32, #tpu.memory_space<vmem>>, vector<16x784xf32>
    %1 = arith.truncf %0 : vector<16x784xf32> to vector<16x784xbf16>
    %c0_1 = arith.constant 0 : index
    %c0_2 = arith.constant 0 : index
    %2 = vector.load %arg2[%c0_1, %c0_2] : memref<784x128xbf16, #tpu.memory_space<vmem>>, vector<784x128xbf16>
    %cst = arith.constant dense<0.000000e+00> : vector<16x128xf32>
    %3 = tpu.matmul %1, %2, %cst {dimension_numbers = #tpu.dot_dimension_numbers<[1], [0], [0], [1], [0, 0, 1, 1], [], []>} : vector<16x784xbf16>, vector<784x128xbf16>, vector<16x128xf32> -> vector<16x128xf32>
    %c0_3 = arith.constant 0 : index
    %c0_4 = arith.constant 0 : index
    %4 = vector.load %arg3[%c0_3, %c0_4] : memref<1x128xf32, #tpu.memory_space<vmem>>, vector<1x128xf32>
    %5 = vector.broadcast %4 : vector<1x128xf32> to vector<16x128xf32>
    %6 = arith.addf %3, %5 : vector<16x128xf32>
    %cst_5 = arith.constant 0.000000e+00 : f32
    %7 = vector.broadcast %cst_5 : f32 to vector<16x128xf32>
    %8 = arith.maximumf %6, %7 : vector<16x128xf32>
    %9 = arith.truncf %8 : vector<16x128xf32> to vector<16x128xbf16>
    %c0_6 = arith.constant 0 : index
    %c0_7 = arith.constant 0 : index
    %10 = vector.load %arg4[%c0_6, %c0_7] : memref<128x128xbf16, #tpu.memory_space<vmem>>, vector<128x128xbf16>
    %cst_8 = arith.constant dense<0.000000e+00> : vector<16x128xf32>
    %11 = tpu.matmul %9, %10, %cst_8 {dimension_numbers = #tpu.dot_dimension_numbers<[1], [0], [0], [1], [0, 0, 1, 1], [], []>} : vector<16x128xbf16>, vector<128x128xbf16>, vector<16x128xf32> -> vector<16x128xf32>
    %c0_9 = arith.constant 0 : index
    %c0_10 = arith.constant 0 : index
    %12 = vector.load %arg5[%c0_9, %c0_10] : memref<1x128xf32, #tpu.memory_space<vmem>>, vector<1x128xf32>
    %13 = vector.broadcast %12 : vector<1x128xf32> to vector<16x128xf32>
    %14 = arith.addf %11, %13 : vector<16x128xf32>
    %15 = arith.truncf %14 : vector<16x128xf32> to vector<16x128xbf16>
    %c0_11 = arith.constant 0 : index
    %c0_12 = arith.constant 0 : index
    %16 = vector.load %arg6[%c0_11, %c0_12] : memref<16x128xbf16, #tpu.memory_space<vmem>>, vector<16x128xbf16>
    tpu.vector_store %arg6[%c0_11, %c0_12], %15 {strides = array<i32>} : memref<16x128xbf16, #tpu.memory_space<vmem>>, vector<16x128xbf16>,
    return
  }
  func.func @transform_0(%arg0: i32) -> (i32, i32) {
    %c0_i32 = arith.constant 0 : i32
    %c0_i32_0 = arith.constant 0 : i32
    return %arg0, %c0_i32 : i32, i32
  }
  func.func @transform_1(%arg0: i32) -> (i32, i32) {
    %c0_i32 = arith.constant 0 : i32
    %c0_i32_0 = arith.constant 0 : i32
    %c0_i32_1 = arith.constant 0 : i32
    return %c0_i32, %c0_i32_0 : i32, i32
  }
  func.func @transform_2(%arg0: i32) -> (i32, i32) {
    %c0_i32 = arith.constant 0 : i32
    %c0_i32_0 = arith.constant 0 : i32
    %c0_i32_1 = arith.constant 0 : i32
    return %c0_i32, %c0_i32_0 : i32, i32
  }
  func.func @transform_3(%arg0: i32) -> (i32, i32) {
    %c0_i32 = arith.constant 0 : i32
    %c0_i32_0 = arith.constant 0 : i32
    %c0_i32_1 = arith.constant 0 : i32
    return %c0_i32, %c0_i32_0 : i32, i32
  }
  func.func @transform_4(%arg0: i32) -> (i32, i32) {
    %c0_i32 = arith.constant 0 : i32
    %c0_i32_0 = arith.constant 0 : i32
    %c0_i32_1 = arith.constant 0 : i32
    return %c0_i32, %c0_i32_0 : i32, i32
  }
  func.func @transform_5(%arg0: i32) -> (i32, i32) {
    %c0_i32 = arith.constant 0 : i32
    %c0_i32_0 = arith.constant 0 : i32
    return %arg0, %c0_i32 : i32, i32
  }
}

</mosaic_0001>

<llo_original>
// kernel: tpu_custom_call.1
$region0: #{tpu_custom_call.1}
  #allocation0 [shape = 'u32[]', space=smem, size = 0x4, offset = 0x4, fixed_abs, tag = 'smem constant byte address 0x4 - core index']
  #allocation1 [shape = 'u32[72,128]{1,0:T(1,128)}', space=vmem, size = 0x9000, scoped, tag = 'internal scratch']
  %s0 = inlined_call_operand.hbm [shape: f32[2,784], index: 0, kind: input, shape index: {}]
  %s1 = inlined_call_operand.hbm [shape: bf16[784,128], index: 1, kind: input, shape index: {}]
  %s2 = inlined_call_operand.vmem [shape: f32[1,128], index: 2, kind: input, shape index: {}]
  %s3 = inlined_call_operand.hbm [shape: bf16[128,128], index: 3, kind: input, shape index: {}]
  %s4 = inlined_call_operand.vmem [shape: f32[1,128], index: 4, kind: input, shape index: {}]
  %s5 = inlined_call_operand.hbm [shape: bf16[2,128], index: 5, kind: output, shape index: {}]
  %s6 = sld [smem:[#allocation0]]
  $region42: #{tpu_custom_call.1} parent=0
    _
  %s8 = ssub.s32 1, %s6
  %s9 = scalar_select 0, %s8, %s6
  $region1: #{tpu_custom_call.1} parent=0
    #allocation2 [shape = 'u8[57344]{0}', space=vmem, size = 0xe000, scoped, tag = 'input window, operand 0, single buffered']
    #allocation3 [shape = 's32[1]{0}', space=sflag, size = 0x4, scoped, tag = 'scoped memory for tpu_custom_call.1']
    #allocation4 [shape = 's32[1]{0}', space=sflag, size = 0x4, scoped, tag = 'scoped memory for tpu_custom_call.1']
    #allocation5 [shape = 'u8[200704]{0}', space=vmem, size = 0x31000, scoped, tag = 'input window, operand 1, single buffered']
    #allocation6 [shape = 's32[1]{0}', space=sflag, size = 0x4, scoped, tag = 'scoped memory for tpu_custom_call.1']
    #allocation7 [shape = 'u8[32768]{0}', space=vmem, size = 0x8000, scoped, tag = 'input window, operand 3, single buffered']
    #allocation8 [shape = 'u8[4096]{0}', space=vmem, size = 0x1000, scoped, tag = 'output window, operand 0, single buffered']
    %10 = vsyncpa [#allocation3], 0
    %11 = vsyncpa [#allocation6], 0
    %12 = vsyncpa [#allocation4], 0
    // Predicated region
    $region2: #{tpu_custom_call.1} parent=1 // pred_check
      _
    $region3: #{tpu_custom_call.1} parent=1 // pred_check_branch
      %14 = sbr.rel (0) target = $region5
    $region4: #{tpu_custom_call.1} parent=1 // pred_region
      %16 = vsyncadd [#allocation3], 1568
      %s17 = sshll.u32 %s0, 4
      %s18 = int_to_ptr.hbm [resolvable:$true] %s17
      %s19 = sshll.u32 [#allocation2], 4
      %s20 = int_to_ptr.vmem [resolvable:$true] %s19
      %25 = dma.hbm_to_vmem [thread:$0]  %s18, 224, %s20, [#allocation3], 224, 224, 14
    $region5: #{tpu_custom_call.1} parent=1 // pred_fallthru
      _
    // Predicated region
    $region6: #{tpu_custom_call.1} parent=1 // pred_check
      _
    $region7: #{tpu_custom_call.1} parent=1 // pred_check_branch
      %27 = sbr.rel (0) target = $region9
    $region8: #{tpu_custom_call.1} parent=1 // pred_region
      %29 = vsyncadd [#allocation6], 0
      %s30 = sshll.u32 %s1, 4
      %s31 = int_to_ptr.hbm [resolvable:$true] %s30
      %s32 = sshll.u32 [#allocation5], 4
      %s33 = int_to_ptr.vmem [resolvable:$true] %s32
      %38 = dma.hbm_to_vmem [thread:$0]  %s31, 6272, %s33, [#allocation6], 64, 64, 4
    $region9: #{tpu_custom_call.1} parent=1 // pred_fallthru
      _
    // Predicated region
    $region10: #{tpu_custom_call.1} parent=1 // pred_check
      _
    $region11: #{tpu_custom_call.1} parent=1 // pred_check_branch
      %40 = sbr.rel (0) target = $region13
    $region12: #{tpu_custom_call.1} parent=1 // pred_region
      _
    $region13: #{tpu_custom_call.1} parent=1 // pred_fallthru
      _
    // Predicated region
    $region14: #{tpu_custom_call.1} parent=1 // pred_check
      _
    $region15: #{tpu_custom_call.1} parent=1 // pred_check_branch
      %42 = sbr.rel (0) target = $region17
    $region16: #{tpu_custom_call.1} parent=1 // pred_region
      %44 = vsyncadd [#allocation6], 0
      %s45 = sshll.u32 %s3, 4
      %s46 = int_to_ptr.hbm [resolvable:$true] %s45
      %s47 = sshll.u32 [#allocation7], 4
      %s48 = int_to_ptr.vmem [resolvable:$true] %s47
      %53 = dma.hbm_to_vmem [thread:$0]  %s46, 1024, %s48, [#allocation6], 64, 64, 4
    $region17: #{tpu_custom_call.1} parent=1 // pred_fallthru
      _
    // Predicated region
    $region18: #{tpu_custom_call.1} parent=1 // pred_check
      _
    $region19: #{tpu_custom_call.1} parent=1 // pred_check_branch
      %55 = sbr.rel (0) target = $region21
    $region20: #{tpu_custom_call.1} parent=1 // pred_region
      _
    $region21: #{tpu_custom_call.1} parent=1 // pred_fallthru
      _
    // Predicated region
    $region22: #{tpu_custom_call.1} parent=1 // pred_check
      _
    $region23: #{tpu_custom_call.1} parent=1 // pred_check_branch
      %57 = sbr.rel (0) target = $region25
    $region24: #{tpu_custom_call.1} parent=1 // pred_region
      %59 = dma.done [#allocation3], 1792
    $region25: #{tpu_custom_call.1} parent=1 // pred_fallthru
      _
    // Predicated region
    $region26: #{tpu_custom_call.1} parent=1 // pred_check
      _
    $region27: #{tpu_custom_call.1} parent=1 // pred_check_branch
      %61 = sbr.rel (0) target = $region29
    $region28: #{tpu_custom_call.1} parent=1 // pred_region
      %63 = dma.done [#allocation6], 6272
    $region29: #{tpu_custom_call.1} parent=1 // pred_fallthru
      _
    // Predicated region
    $region30: #{tpu_custom_call.1} parent=1 // pred_check
      _
    $region31: #{tpu_custom_call.1} parent=1 // pred_check_branch
      %65 = sbr.rel (0) target = $region33
    $region32: #{tpu_custom_call.1} parent=1 // pred_region
      %67 = dma.done [#allocation6], 1024
    $region33: #{tpu_custom_call.1} parent=1 // pred_fallthru
      _
    %v69 = vld [vmem:[#allocation2] sm:$0xff]
    %v70 = vld [vmem:[#allocation2 + $0x8] sm:$0x3f]
    %v71 = vld [vmem:[#allocation2 + $0xe] sm:$0xff]
    %v72 = vld [vmem:[#allocation2 + $0x16] sm:$0x3f]
    %v73 = vld [vmem:[#allocation2 + $0x1c] sm:$0xff]
    %v74 = vld [vmem:[#allocation2 + $0x24] sm:$0x3f]
    %v75 = vld [vmem:[#allocation2 + $0x2a] sm:$0xff]
    %v76 = vld [vmem:[#allocation2 + $0x32] sm:$0x3f]
    %v77 = vld [vmem:[#allocation2 + $0x38] sm:$0xff]
    %v78 = vld [vmem:[#allocation2 + $0x40] sm:$0x3f]
    %v79 = vld [vmem:[#allocation2 + $0x46] sm:$0xff]
    %v80 = vld [vmem:[#allocation2 + $0x4e] sm:$0x3f]
    %v81 = vld [vmem:[#allocation2 + $0x54] sm:$0xff]
    %v82 = vld [vmem:[#allocation2 + $0x5c] sm:$0x3f]
    %v83 = vld [vmem:[#allocation2 + $0x62] sm:$0xff]
    %v84 = vld [vmem:[#allocation2 + $0x6a] sm:$0x3f]
    %101 = vst [vmem:[#allocation1] ss:$4 sm:$0xff] %v69
    %s102 = scalar_lea.vmem [#allocation1], 1
    %103 = vst [vmem:[%s102] ss:$4 sm:$0xff] %v71
    %s104 = scalar_lea.vmem [#allocation1], 2
    %105 = vst [vmem:[%s104] ss:$4 sm:$0xff] %v73
    %s106 = scalar_lea.vmem [#allocation1], 3
    %107 = vst [vmem:[%s106] ss:$4 sm:$0xff] %v75
    %s108 = scalar_lea.vmem [#allocation1], 32
    %109 = vst [vmem:[%s108] ss:$4 sm:$0xff] %v70
    %s110 = scalar_lea.vmem [#allocation1], 33
    %111 = vst [vmem:[%s110] ss:$4 sm:$0xff] %v72
    %s112 = scalar_lea.vmem [#allocation1], 34
    %113 = vst [vmem:[%s112] ss:$4 sm:$0xff] %v74
    %s114 = scalar_lea.vmem [#allocation1], 35
    %115 = vst [vmem:[%s114] ss:$4 sm:$0xff] %v76
    %v116 = vld.sshfl [vmem:[#allocation1] sm:$0xff pattern:$0x73625140]
    %v117 = vld.sshfl [vmem:[#allocation1 + $0x8] sm:$0xff pattern:$0x73625140]
    %v118 = vld.sshfl [vmem:[#allocation1 + $0x10] sm:$0xff pattern:$0x73625140]
    %v119 = vld.sshfl [vmem:[#allocation1 + $0x18] sm:$0xff pattern:$0x73625140]
    %v120 = vld.sshfl [vmem:[#allocation1 + $0x20] sm:$0xff pattern:$0x73625140]
    %v121 = vld.sshfl [vmem:[#allocation1 + $0x28] sm:$0xff pattern:$0x73625140]
    %v122 = vld.sshfl [vmem:[#allocation1 + $0x30] sm:$0xff pattern:$0x73625140]
    %123 = vst [vmem:[#allocation1] ss:$4 sm:$0xff] %v77
    %124 = vst [vmem:[%s102] ss:$4 sm:$0xff] %v79
    %125 = vst [vmem:[%s104] ss:$4 sm:$0xff] %v81
    %126 = vst [vmem:[%s106] ss:$4 sm:$0xff] %v83
    %127 = vst [vmem:[%s108] ss:$4 sm:$0xff] %v78
    %128 = vst [vmem:[%s110] ss:$4 sm:$0xff] %v80
    %129 = vst [vmem:[%s112] ss:$4 sm:$0xff] %v82
    %130 = vst [vmem:[%s114] ss:$4 sm:$0xff] %v84
    %v131 = vld.sshfl [vmem:[#allocation1] sm:$0xff pattern:$0x73625140]
    %v132 = vld.sshfl [vmem:[#allocation1 + $0x8] sm:$0xff pattern:$0x73625140]
    %v133 = vld.sshfl [vmem:[#allocation1 + $0x10] sm:$0xff pattern:$0x73625140]
    %v134 = vld.sshfl [vmem:[#allocation1 + $0x18] sm:$0xff pattern:$0x73625140]
    %v135 = vld.sshfl [vmem:[#allocation1 + $0x20] sm:$0xff pattern:$0x73625140]
    %v136 = vld.sshfl [vmem:[#allocation1 + $0x28] sm:$0xff pattern:$0x73625140]
    %v137 = vld.sshfl [vmem:[#allocation1 + $0x30] sm:$0xff pattern:$0x73625140]
    %v152 = vpack.c.bf16 %v131, %v116
    %v153 = vpack.c.bf16 %v132, %v117
    %v154 = vpack.c.bf16 %v133, %v118
    %v155 = vpack.c.bf16 %v134, %v119
    %v156 = vpack.c.bf16 %v135, %v120
    %v157 = vpack.c.bf16 %v136, %v121
    %v158 = vpack.c.bf16 %v137, %v122
    %v159 = vld [vmem:[#allocation5] sm:$0xf]
    %v160 = vld [vmem:[#allocation5 + $0x4] sm:$0xf]
    %v161 = vld [vmem:[#allocation5 + $0x8] sm:$0xf]
    %v162 = vld [vmem:[#allocation5 + $0xc] sm:$0xf]
    %v163 = vld [vmem:[#allocation5 + $0x10] sm:$0xf]
    %v164 = vld [vmem:[#allocation5 + $0x14] sm:$0xf]
    %v165 = vld [vmem:[#allocation5 + $0x18] sm:$0xf]
    %v166 = vld [vmem:[#allocation5 + $0x1c] sm:$0xf]
    %v167 = vld [vmem:[#allocation5 + $0x20] sm:$0xf]
    %v168 = vld [vmem:[#allocation5 + $0x24] sm:$0xf]
    %v169 = vld [vmem:[#allocation5 + $0x28] sm:$0xf]
    %v170 = vld [vmem:[#allocation5 + $0x2c] sm:$0xf]
    %v171 = vld [vmem:[#allocation5 + $0x30] sm:$0xf]
    %v172 = vld [vmem:[#allocation5 + $0x34] sm:$0xf]
    %v173 = vld [vmem:[#allocation5 + $0x38] sm:$0xf]
    %v174 = vld [vmem:[#allocation5 + $0x3c] sm:$0xf]
    %v175 = vld [vmem:[#allocation5 + $0x40] sm:$0xf]
    %v176 = vld [vmem:[#allocation5 + $0x44] sm:$0xf]
    %v177 = vld [vmem:[#allocation5 + $0x48] sm:$0xf]
    %v178 = vld [vmem:[#allocation5 + $0x4c] sm:$0xf]
    %v179 = vld [vmem:[#allocation5 + $0x50] sm:$0xf]
    %v180 = vld [vmem:[#allocation5 + $0x54] sm:$0xf]
    %v181 = vld [vmem:[#allocation5 + $0x58] sm:$0xf]
    %v182 = vld [vmem:[#allocation5 + $0x5c] sm:$0xf]
    %v183 = vld [vmem:[#allocation5 + $0x60] sm:$0xf]
    %v184 = vld [vmem:[#allocation5 + $0x64] sm:$0xf]
    %v185 = vld [vmem:[#allocation5 + $0x68] sm:$0xf]
    %v186 = vld [vmem:[#allocation5 + $0x6c] sm:$0xf]
    %v187 = vld [vmem:[#allocation5 + $0x70] sm:$0xf]
    %v188 = vld [vmem:[#allocation5 + $0x74] sm:$0xf]
    %v189 = vld [vmem:[#allocation5 + $0x78] sm:$0xf]
    %v190 = vld [vmem:[#allocation5 + $0x7c] sm:$0xf]
    %v191 = vld [vmem:[#allocation5 + $0x80] sm:$0xf]
    %v192 = vld [vmem:[#allocation5 + $0x84] sm:$0xf]
    %v193 = vld [vmem:[#allocation5 + $0x88] sm:$0xf]
    %v194 = vld [vmem:[#allocation5 + $0x8c] sm:$0xf]
    %v195 = vld [vmem:[#allocation5 + $0x90] sm:$0xf]
    %v196 = vld [vmem:[#allocation5 + $0x94] sm:$0xf]
    %v197 = vld [vmem:[#allocation5 + $0x98] sm:$0xf]
    %v198 = vld [vmem:[#allocation5 + $0x9c] sm:$0xf]
    %v199 = vld [vmem:[#allocation5 + $0xa0] sm:$0xf]
    %v200 = vld [vmem:[#allocation5 + $0xa4] sm:$0xf]
    %v201 = vld [vmem:[#allocation5 + $0xa8] sm:$0xf]
    %v202 = vld [vmem:[#allocation5 + $0xac] sm:$0xf]
    %v203 = vld [vmem:[#allocation5 + $0xb0] sm:$0xf]
    %v204 = vld [vmem:[#allocation5 + $0xb4] sm:$0xf]
    %v205 = vld [vmem:[#allocation5 + $0xb8] sm:$0xf]
    %v206 = vld [vmem:[#allocation5 + $0xbc] sm:$0xf]
    %v207 = vld [vmem:[#allocation5 + $0xc0] sm:$0xf]
    %v208 = vld [vmem:[#allocation5 + $0xc4] sm:$0xf]
    %v209 = vld [vmem:[#allocation5 + $0xc8] sm:$0xf]
    %v210 = vld [vmem:[#allocation5 + $0xcc] sm:$0xf]
    %v211 = vld [vmem:[#allocation5 + $0xd0] sm:$0xf]
    %v212 = vld [vmem:[#allocation5 + $0xd4] sm:$0xf]
    %v213 = vld [vmem:[#allocation5 + $0xd8] sm:$0xf]
    %v214 = vld [vmem:[#allocation5 + $0xdc] sm:$0xf]
    %v215 = vld [vmem:[#allocation5 + $0xe0] sm:$0xf]
    %v216 = vld [vmem:[#allocation5 + $0xe4] sm:$0xf]
    %v217 = vld [vmem:[#allocation5 + $0xe8] sm:$0xf]
    %v218 = vld [vmem:[#allocation5 + $0xec] sm:$0xf]
    %v219 = vld [vmem:[#allocation5 + $0xf0] sm:$0xf]
    %v220 = vld [vmem:[#allocation5 + $0xf4] sm:$0xf]
    %v221 = vld [vmem:[#allocation5 + $0xf8] sm:$0xf]
    %v222 = vld [vmem:[#allocation5 + $0xfc] sm:$0xf]
    %v223 = vld [vmem:[#allocation5 + $0x100] sm:$0xf]
    %v224 = vld [vmem:[#allocation5 + $0x104] sm:$0xf]
    %v225 = vld [vmem:[#allocation5 + $0x108] sm:$0xf]
    %v226 = vld [vmem:[#allocation5 + $0x10c] sm:$0xf]
    %v227 = vld [vmem:[#allocation5 + $0x110] sm:$0xf]
    %v228 = vld [vmem:[#allocation5 + $0x114] sm:$0xf]
    %v229 = vld [vmem:[#allocation5 + $0x118] sm:$0xf]
    %v230 = vld [vmem:[#allocation5 + $0x11c] sm:$0xf]
    %v231 = vld [vmem:[#allocation5 + $0x120] sm:$0xf]
    %v232 = vld [vmem:[#allocation5 + $0x124] sm:$0xf]
    %v233 = vld [vmem:[#allocation5 + $0x128] sm:$0xf]
    %v234 = vld [vmem:[#allocation5 + $0x12c] sm:$0xf]
    %v235 = vld [vmem:[#allocation5 + $0x130] sm:$0xf]
    %v236 = vld [vmem:[#allocation5 + $0x134] sm:$0xf]
    %v237 = vld [vmem:[#allocation5 + $0x138] sm:$0xf]
    %v238 = vld [vmem:[#allocation5 + $0x13c] sm:$0xf]
    %v239 = vld [vmem:[#allocation5 + $0x140] sm:$0xf]
    %v240 = vld [vmem:[#allocation5 + $0x144] sm:$0xf]
    %v241 = vld [vmem:[#allocation5 + $0x148] sm:$0xf]
    %v242 = vld [vmem:[#allocation5 + $0x14c] sm:$0xf]
    %v243 = vld [vmem:[#allocation5 + $0x150] sm:$0xf]
    %v244 = vld [vmem:[#allocation5 + $0x154] sm:$0xf]
    %v245 = vld [vmem:[#allocation5 + $0x158] sm:$0xf]
    %v246 = vld [vmem:[#allocation5 + $0x15c] sm:$0xf]
    %v247 = vld [vmem:[#allocation5 + $0x160] sm:$0xf]
    %v248 = vld [vmem:[#allocation5 + $0x164] sm:$0xf]
    %v249 = vld [vmem:[#allocation5 + $0x168] sm:$0xf]
    %v250 = vld [vmem:[#allocation5 + $0x16c] sm:$0xf]
    %v251 = vld [vmem:[#allocation5 + $0x170] sm:$0xf]
    %v252 = vld [vmem:[#allocation5 + $0x174] sm:$0xf]
    %v253 = vld [vmem:[#allocation5 + $0x178] sm:$0xf]
    %v254 = vld [vmem:[#allocation5 + $0x17c] sm:$0xf]
    %v255 = vld [vmem:[#allocation5 + $0x180] sm:$0xf]
    %v256 = vld [vmem:[#allocation5 + $0x184] sm:$0xf]
    %v257 = vld [vmem:[%s2] sm:$0x1]
    %v259 = vperm.slane %v257, 0
    %v359 = vunpack.c.l.b16 %v159
    %v360 = vunpack.c.l.b16 %v160
    %v361 = vunpack.c.l.b16 %v161
    %v362 = vunpack.c.l.b16 %v162
    %v363 = vunpack.c.l.b16 %v163
    %v364 = vunpack.c.l.b16 %v164
    %v365 = vunpack.c.l.b16 %v165
    %v366 = vunpack.c.l.b16 %v166
    %v367 = vunpack.c.l.b16 %v167
    %v368 = vunpack.c.l.b16 %v168
    %v369 = vunpack.c.l.b16 %v169
    %v370 = vunpack.c.l.b16 %v170
    %v371 = vunpack.c.l.b16 %v171
    %v372 = vunpack.c.l.b16 %v172
    %v373 = vunpack.c.l.b16 %v173
    %v374 = vunpack.c.l.b16 %v174
    %v375 = vunpack.c.l.b16 %v175
    %v376 = vunpack.c.l.b16 %v176
    %v377 = vunpack.c.l.b16 %v177
    %v378 = vunpack.c.l.b16 %v178
    %v379 = vunpack.c.l.b16 %v179
    %v380 = vunpack.c.l.b16 %v180
    %v381 = vunpack.c.l.b16 %v181
    %v382 = vunpack.c.l.b16 %v182
    %v383 = vunpack.c.l.b16 %v183
    %v384 = vunpack.c.l.b16 %v184
    %v385 = vunpack.c.l.b16 %v185
    %v386 = vunpack.c.l.b16 %v186
    %v387 = vunpack.c.l.b16 %v187
    %v388 = vunpack.c.l.b16 %v188
    %v389 = vunpack.c.l.b16 %v189
    %v390 = vunpack.c.l.b16 %v190
    %v391 = vunpack.c.l.b16 %v191
    %v392 = vunpack.c.l.b16 %v192
    %v393 = vunpack.c.l.b16 %v193
    %v394 = vunpack.c.l.b16 %v194
    %v395 = vunpack.c.l.b16 %v195
    %v396 = vunpack.c.l.b16 %v196
    %v397 = vunpack.c.l.b16 %v197
    %v398 = vunpack.c.l.b16 %v198
    %v399 = vunpack.c.l.b16 %v199
    %v400 = vunpack.c.l.b16 %v200
    %v401 = vunpack.c.l.b16 %v201
    %v402 = vunpack.c.l.b16 %v202
    %v403 = vunpack.c.l.b16 %v203
    %v404 = vunpack.c.l.b16 %v204
    %v405 = vunpack.c.l.b16 %v205
    %v406 = vunpack.c.l.b16 %v206
    %v407 = vunpack.c.l.b16 %v207
    %v408 = vunpack.c.l.b16 %v208
    %v409 = vunpack.c.l.b16 %v209
    %v410 = vunpack.c.l.b16 %v210
    %v411 = vunpack.c.l.b16 %v211
    %v412 = vunpack.c.l.b16 %v212
    %v413 = vunpack.c.l.b16 %v213
    %v414 = vunpack.c.l.b16 %v214
    %v415 = vunpack.c.l.b16 %v215
    %v416 = vunpack.c.l.b16 %v216
    %v417 = vunpack.c.l.b16 %v217
    %v418 = vunpack.c.l.b16 %v218
    %v419 = vunpack.c.l.b16 %v219
    %v420 = vunpack.c.l.b16 %v220
    %v421 = vunpack.c.l.b16 %v221
    %v422 = vunpack.c.l.b16 %v222
    %v423 = vunpack.c.l.b16 %v223
    %v424 = vunpack.c.l.b16 %v224
    %v425 = vunpack.c.l.b16 %v225
    %v426 = vunpack.c.l.b16 %v226
    %v427 = vunpack.c.l.b16 %v227
    %v428 = vunpack.c.l.b16 %v228
    %v429 = vunpack.c.l.b16 %v229
    %v430 = vunpack.c.l.b16 %v230
    %v431 = vunpack.c.l.b16 %v231
    %v432 = vunpack.c.l.b16 %v232
    %v433 = vunpack.c.l.b16 %v233
    %v434 = vunpack.c.l.b16 %v234
    %v435 = vunpack.c.l.b16 %v235
    %v436 = vunpack.c.l.b16 %v236
    %v437 = vunpack.c.l.b16 %v237
    %v438 = vunpack.c.l.b16 %v238
    %v439 = vunpack.c.l.b16 %v239
    %v440 = vunpack.c.l.b16 %v240
    %v441 = vunpack.c.l.b16 %v241
    %v442 = vunpack.c.l.b16 %v242
    %v443 = vunpack.c.l.b16 %v243
    %v444 = vunpack.c.l.b16 %v244
    %v445 = vunpack.c.l.b16 %v245
    %v446 = vunpack.c.l.b16 %v246
    %v447 = vunpack.c.l.b16 %v247
    %v448 = vunpack.c.l.b16 %v248
    %v449 = vunpack.c.l.b16 %v249
    %v450 = vunpack.c.l.b16 %v250
    %v451 = vunpack.c.l.b16 %v251
    %v452 = vunpack.c.l.b16 %v252
    %v453 = vunpack.c.l.b16 %v253
    %v454 = vunpack.c.l.b16 %v254
    %v455 = vunpack.c.l.b16 %v255
    %v456 = vunpack.c.l.b16 %v256
    %v457 = vpack.c.b16 %v360, %v359
    %v458 = vpack.c.b16 %v362, %v361
    %v459 = vpack.c.b16 %v364, %v363
    %v460 = vpack.c.b16 %v366, %v365
    %v461 = vpack.c.b16 %v368, %v367
    %v462 = vpack.c.b16 %v370, %v369
    %v463 = vpack.c.b16 %v372, %v371
    %v464 = vpack.c.b16 %v374, %v373
    %v465 = vpack.c.b16 %v376, %v375
    %v466 = vpack.c.b16 %v378, %v377
    %v467 = vpack.c.b16 %v380, %v379
    %v468 = vpack.c.b16 %v382, %v381
    %v469 = vpack.c.b16 %v384, %v383
    %v470 = vpack.c.b16 %v386, %v385
    %v471 = vpack.c.b16 %v388, %v387
    %v472 = vpack.c.b16 %v390, %v389
    %v473 = vpack.c.b16 %v392, %v391
    %v474 = vpack.c.b16 %v394, %v393
    %v475 = vpack.c.b16 %v396, %v395
    %v476 = vpack.c.b16 %v398, %v397
    %v477 = vpack.c.b16 %v400, %v399
    %v478 = vpack.c.b16 %v402, %v401
    %v479 = vpack.c.b16 %v404, %v403
    %v480 = vpack.c.b16 %v406, %v405
    %v481 = vpack.c.b16 %v408, %v407
    %v482 = vpack.c.b16 %v410, %v409
    %v483 = vpack.c.b16 %v412, %v411
    %v484 = vpack.c.b16 %v414, %v413
    %v485 = vpack.c.b16 %v416, %v415
    %v486 = vpack.c.b16 %v418, %v417
    %v487 = vpack.c.b16 %v420, %v419
    %v488 = vpack.c.b16 %v422, %v421
    %v489 = vpack.c.b16 %v424, %v423
    %v490 = vpack.c.b16 %v426, %v425
    %v491 = vpack.c.b16 %v428, %v427
    %v492 = vpack.c.b16 %v430, %v429
    %v493 = vpack.c.b16 %v432, %v431
    %v494 = vpack.c.b16 %v434, %v433
    %v495 = vpack.c.b16 %v436, %v435
    %v496 = vpack.c.b16 %v438, %v437
    %v497 = vpack.c.b16 %v440, %v439
    %v498 = vpack.c.b16 %v442, %v441
    %v499 = vpack.c.b16 %v444, %v443
    %v500 = vpack.c.b16 %v446, %v445
    %v501 = vpack.c.b16 %v448, %v447
    %v502 = vpack.c.b16 %v450, %v449
    %v503 = vpack.c.b16 %v452, %v451
    %v504 = vpack.c.b16 %v454, %v453
    %v505 = vpack.c.b16 %v456, %v455
    %vm555 = vcmask 130048
    %v557 = vsel %vm555, %v158, 0
    %559 = vmatpush.bf16.msra.mxu0 %v464
    %560 = vmatpush.bf16.msra.mxu0 %v463
    %561 = vmatpush.bf16.msra.mxu0 %v462
    %562 = vmatpush.bf16.msra.mxu0 %v461
    %563 = vmatpush.bf16.msra.mxu0 %v460
    %564 = vmatpush.bf16.msra.mxu0 %v459
    %565 = vmatpush.bf16.msra.mxu0 %v458
    %566 = vmatpush.bf16.msra.mxu0 %v457
    %567 = vmatmul.bf16.gmra.mxu0 %v152
    %v568 = vpop.f32.mrf.mxu0
    %v569 = vadd.f32 %v259, %v568
    %v570 = vpop.f32.mrf.mxu0
    %v571 = vadd.f32 %v259, %v570
    %572 = vdwg.mxu0
    %573 = vmatpush.bf16.msra.mxu0 %v472
    %574 = vmatpush.bf16.msra.mxu0 %v471
    %575 = vmatpush.bf16.msra.mxu0 %v470
    %576 = vmatpush.bf16.msra.mxu0 %v469
    %577 = vmatpush.bf16.msra.mxu0 %v468
    %578 = vmatpush.bf16.msra.mxu0 %v467
    %579 = vmatpush.bf16.msra.mxu0 %v466
    %580 = vmatpush.bf16.msra.mxu0 %v465
    %581 = vmatmul.bf16.gmra.mxu0 %v153
    %v582 = vpop.f32.mrf.mxu0
    %v583 = vadd.f32 %v569, %v582
    %v584 = vpop.f32.mrf.mxu0
    %v585 = vadd.f32 %v571, %v584
    %586 = vdwg.mxu0
    %587 = vmatpush.bf16.msra.mxu0 %v480
    %588 = vmatpush.bf16.msra.mxu0 %v479
    %589 = vmatpush.bf16.msra.mxu0 %v478
    %590 = vmatpush.bf16.msra.mxu0 %v477
    %591 = vmatpush.bf16.msra.mxu0 %v476
    %592 = vmatpush.bf16.msra.mxu0 %v475
    %593 = vmatpush.bf16.msra.mxu0 %v474
    %594 = vmatpush.bf16.msra.mxu0 %v473
    %595 = vmatmul.bf16.gmra.mxu0 %v154
    %v596 = vpop.f32.mrf.mxu0
    %v597 = vadd.f32 %v583, %v596
    %v598 = vpop.f32.mrf.mxu0
    %v599 = vadd.f32 %v585, %v598
    %600 = vdwg.mxu0
    %601 = vmatpush.bf16.msra.mxu0 %v488
    %602 = vmatpush.bf16.msra.mxu0 %v487
    %603 = vmatpush.bf16.msra.mxu0 %v486
    %604 = vmatpush.bf16.msra.mxu0 %v485
    %605 = vmatpush.bf16.msra.mxu0 %v484
    %606 = vmatpush.bf16.msra.mxu0 %v483
    %607 = vmatpush.bf16.msra.mxu0 %v482
    %608 = vmatpush.bf16.msra.mxu0 %v481
    %609 = vmatmul.bf16.gmra.mxu0 %v155
    %v610 = vpop.f32.mrf.mxu0
    %v611 = vadd.f32 %v597, %v610
    %v612 = vpop.f32.mrf.mxu0
    %v613 = vadd.f32 %v599, %v612
    %614 = vdwg.mxu0
    %615 = vmatpush.bf16.msra.mxu0 %v496
    %616 = vmatpush.bf16.msra.mxu0 %v495
    %617 = vmatpush.bf16.msra.mxu0 %v494
    %618 = vmatpush.bf16.msra.mxu0 %v493
    %619 = vmatpush.bf16.msra.mxu0 %v492
    %620 = vmatpush.bf16.msra.mxu0 %v491
    %621 = vmatpush.bf16.msra.mxu0 %v490
    %622 = vmatpush.bf16.msra.mxu0 %v489
    %623 = vmatmul.bf16.gmra.mxu0 %v156
    %v624 = vpop.f32.mrf.mxu0
    %v625 = vadd.f32 %v611, %v624
    %v626 = vpop.f32.mrf.mxu0
    %v627 = vadd.f32 %v613, %v626
    %628 = vdwg.mxu0
    %629 = vmatpush.bf16.msra.mxu0 %v504
    %630 = vmatpush.bf16.msra.mxu0 %v503
    %631 = vmatpush.bf16.msra.mxu0 %v502
    %632 = vmatpush.bf16.msra.mxu0 %v501
    %633 = vmatpush.bf16.msra.mxu0 %v500
    %634 = vmatpush.bf16.msra.mxu0 %v499
    %635 = vmatpush.bf16.msra.mxu0 %v498
    %636 = vmatpush.bf16.msra.mxu0 %v497
    %637 = vmatmul.bf16.gmra.mxu0 %v157
    %v638 = vpop.f32.mrf.mxu0
    %v639 = vadd.f32 %v625, %v638
    %v640 = vpop.f32.mrf.mxu0
    %v641 = vadd.f32 %v627, %v640
    %642 = vdwg.mxu0
    %643 = vmatpush.bf16.msra.mxu0 0
    %644 = vmatpush.bf16.msra.mxu0 0
    %645 = vmatpush.bf16.msra.mxu0 0
    %646 = vmatpush.bf16.msra.mxu0 0
    %647 = vmatpush.bf16.msra.mxu0 0
    %648 = vmatpush.bf16.msra.mxu0 0
    %649 = vmatpush.bf16.msra.mxu0 0
    %650 = vmatpush.bf16.msra.mxu0 %v505
    %651 = vmatmul.bf16.gmra.mxu0 %v557
    %v652 = vpop.f32.mrf.mxu0
    %v653 = vadd.f32 %v639, %v652
    %v654 = vpop.f32.mrf.mxu0
    %v655 = vadd.f32 %v641, %v654
    %656 = vdwg.mxu0
    %v657 = vmax.f32 %v653, 0.0
    %v658 = vmax.f32 %v655, 0.0
    %v659 = vpack.c.bf16 %v658, %v657
    %v660 = vld [vmem:[#allocation7] sm:$0xf]
    %v661 = vld [vmem:[#allocation7 + $0x4] sm:$0xf]
    %v662 = vld [vmem:[#allocation7 + $0x8] sm:$0xf]
    %v663 = vld [vmem:[#allocation7 + $0xc] sm:$0xf]
    %v664 = vld [vmem:[#allocation7 + $0x10] sm:$0xf]
    %v665 = vld [vmem:[#allocation7 + $0x14] sm:$0xf]
    %v666 = vld [vmem:[#allocation7 + $0x18] sm:$0xf]
    %v667 = vld [vmem:[#allocation7 + $0x1c] sm:$0xf]
    %v668 = vld [vmem:[#allocation7 + $0x20] sm:$0xf]
    %v669 = vld [vmem:[#allocation7 + $0x24] sm:$0xf]
    %v670 = vld [vmem:[#allocation7 + $0x28] sm:$0xf]
    %v671 = vld [vmem:[#allocation7 + $0x2c] sm:$0xf]
    %v672 = vld [vmem:[#allocation7 + $0x30] sm:$0xf]
    %v673 = vld [vmem:[#allocation7 + $0x34] sm:$0xf]
    %v674 = vld [vmem:[#allocation7 + $0x38] sm:$0xf]
    %v675 = vld [vmem:[#allocation7 + $0x3c] sm:$0xf]
    %v676 = vld [vmem:[%s4] sm:$0x1]
    %v678 = vperm.slane %v676, 0
    %v696 = vunpack.c.l.b16 %v660
    %v697 = vunpack.c.l.b16 %v661
    %v698 = vunpack.c.l.b16 %v662
    %v699 = vunpack.c.l.b16 %v663
    %v700 = vunpack.c.l.b16 %v664
    %v701 = vunpack.c.l.b16 %v665
    %v702 = vunpack.c.l.b16 %v666
    %v703 = vunpack.c.l.b16 %v667
    %v704 = vunpack.c.l.b16 %v668
    %v705 = vunpack.c.l.b16 %v669
    %v706 = vunpack.c.l.b16 %v670
    %v707 = vunpack.c.l.b16 %v671
    %v708 = vunpack.c.l.b16 %v672
    %v709 = vunpack.c.l.b16 %v673
    %v710 = vunpack.c.l.b16 %v674
    %v711 = vunpack.c.l.b16 %v675
    %v712 = vpack.c.b16 %v697, %v696
    %v713 = vpack.c.b16 %v699, %v698
    %v714 = vpack.c.b16 %v701, %v700
    %v715 = vpack.c.b16 %v703, %v702
    %v716 = vpack.c.b16 %v705, %v704
    %v717 = vpack.c.b16 %v707, %v706
    %v718 = vpack.c.b16 %v709, %v708
    %v719 = vpack.c.b16 %v711, %v710
    %728 = vmatpush.bf16.msra.mxu0 %v719
    %729 = vmatpush.bf16.msra.mxu0 %v718
    %730 = vmatpush.bf16.msra.mxu0 %v717
    %731 = vmatpush.bf16.msra.mxu0 %v716
    %732 = vmatpush.bf16.msra.mxu0 %v715
    %733 = vmatpush.bf16.msra.mxu0 %v714
    %734 = vmatpush.bf16.msra.mxu0 %v713
    %735 = vmatpush.bf16.msra.mxu0 %v712
    %736 = vmatmul.bf16.gmra.mxu0 %v659
    %v737 = vpop.f32.mrf.mxu0
    %v738 = vadd.f32 %v678, %v737
    %v739 = vpop.f32.mrf.mxu0
    %v740 = vadd.f32 %v678, %v739
    %741 = vdwg.mxu0
    %v742 = vpack.c.bf16 %v738, %v738
    %v743 = vpack.c.bf16 %v740, %v740
    %v746 = vrot.slane %v742, 3
    %v747 = vrot.slane %v743, 3
    %vm748 = vcmask 1040384
    %v751 = vsel %vm748, %v742, %v746
    %vm752 = vcmask 1041409
    %v753 = vsel %vm752, %v742, %v746
    %v755 = vrot.slane %v753, 1
    %vm756 = vcmask 1042434
    %v757 = vsel %vm756, %v742, %v746
    %v759 = vrot.slane %v757, 2
    %vm760 = vcmask 1043459
    %v761 = vsel %vm760, %v742, %v746
    %v763 = vrot.slane %v761, 3
    %v766 = vsel %vm748, %v743, %v747
    %v767 = vsel %vm752, %v743, %v747
    %v769 = vrot.slane %v767, 1
    %v770 = vsel %vm756, %v743, %v747
    %v772 = vrot.slane %v770, 2
    %v773 = vsel %vm760, %v743, %v747
    %v775 = vrot.slane %v773, 3
    %784 = vst [vmem:[#allocation8] sm:$0x1] %v751
    %785 = vst [vmem:[#allocation8 + $0x1] sm:$0x1] %v755
    %786 = vst [vmem:[#allocation8 + $0x2] sm:$0x1] %v759
    %787 = vst [vmem:[#allocation8 + $0x3] sm:$0x1] %v763
    %788 = vst [vmem:[#allocation8 + $0x4] sm:$0x1] %v766
    %789 = vst [vmem:[#allocation8 + $0x5] sm:$0x1] %v769
    %790 = vst [vmem:[#allocation8 + $0x6] sm:$0x1] %v772
    %791 = vst [vmem:[#allocation8 + $0x7] sm:$0x1] %v775
    // Predicated region
    $region34: #{tpu_custom_call.1} parent=1 // pred_check
      _
    $region35: #{tpu_custom_call.1} parent=1 // pred_check_branch
      %793 = sbr.rel (0) target = $region37
    $region36: #{tpu_custom_call.1} parent=1 // pred_region
      %795 = vsyncadd [#allocation4], 112
      %s796 = sshll.u32 [#allocation8], 4
      %s797 = int_to_ptr.vmem [resolvable:$true] %s796
      %s798 = sshll.u32 %s5, 4
      %s799 = int_to_ptr.hbm [resolvable:$true] %s798
      %804 = dma.vmem_to_hbm [thread:$0]  %s797, 16, %s799, [#allocation4], 16, 16, 1
    $region37: #{tpu_custom_call.1} parent=1 // pred_fallthru
      _
    // Predicated region
    $region38: #{tpu_custom_call.1} parent=1 // pred_check
      _
    $region39: #{tpu_custom_call.1} parent=1 // pred_check_branch
      %806 = sbr.rel (0) target = $region41
    $region40: #{tpu_custom_call.1} parent=1 // pred_region
      %808 = dma.done [#allocation4], 128
    $region41: #{tpu_custom_call.1} parent=1 // pred_fallthru
      _
    %809 = vsyncpa [#allocation3], 1
    %810 = vsyncpa [#allocation6], 1
    %811 = vsyncpa [#allocation4], 1

</llo_original>
